<compile_context>
chip_gen: v7x
topology: tpu7x:2x2x1
jax: 0.10.0
libtpu: 0.0.40
codegen_flags: <defaults>
</compile_context>

<pallas_src>
import jax
import jax.numpy as jnp
import numpy as np
from jax.experimental import pallas as pl
from jax.experimental.pallas import tpu as pltpu

# ---------------- hyperparameters (small, structure-consistent) ----------------
B = 2          # batch
C = 8          # EEG channels        (module default: 60)
T = 64         # time_window         (module default: 151)
K1 = 16        # kernelLength        (module default: 64)
K2 = 8         # kernelLength2       (module default: 16)
F1 = 8
D = 2
F2 = 8
NCLS = 2
F1D = F1 * D

PAD1 = K1 // 2
PAD2 = K2 // 2
TP1 = T + 2 * PAD1             # padded time for conv1            = 80
TO1 = TP1 - K1 + 1             # conv1 output width               = 65
TPOOL1 = (TO1 - 4) // 4 + 1    # AvgPool2d((1,4), stride=4)       = 16  (floor mode)
TPAD2 = TPOOL1 + 2 * PAD2      # padded time for block-2 conv     = 24
TO2 = TPAD2 - K2 + 1           # block-2 depthwise conv output    = 17
TPOOL2 = (TO2 - 8) // 8 + 1    # AvgPool2d((1,8), stride=8)       = 2   (floor mode)
FLAT = F2 * TPOOL2             # classifier input size            = 16
BN_EPS = 1e-3

R1 = B * F1D                   # rows after block-1 (batch row-stacked) = 32
R2 = B * F2                    # rows after the pointwise conv          = 16
BCK1 = B * C * K1              # im2col rows / block-1 contraction dim  = 256

# bf16 weight-slab static row offsets (all multiples of 16 = bf16 sublane tile)
POOL1_R0 = 32                  # pool1 matrix            rows [32, 32+65)
W4_R0 = 112                    # pointwise conv weights  rows [112, 128)
WC_R0 = 128                    # classifier (class-major) rows [128, 160)
WMAT_ROWS = 160
WMAT_COLS = BCK1               # 256


# ------------------------------ Pallas kernel ------------------------------
def _elu(h):
    # exp only on the non-positive branch (avoids inf that jnp.where would mask)
    return jnp.where(h > 0, h, jnp.exp(jnp.minimum(h, 0.0)) - 1.0)


def _softmax(z):
    m = jnp.max(z, axis=1, keepdims=True)
    e = jnp.exp(z - m)
    return e / jnp.sum(e, axis=1, keepdims=True)


def eegnet_fused_kernel(xcol_ref, wmat_ref, wrow_ref, out_ref):
    # xcol_ref : (BCK1, TO1)  bf16  im2col of the zero-padded input (batch stacked)
    # wmat_ref : (160, 256)   bf16  [W1comb | pool1 | w4blk | wcls] at static offsets
    # wrow_ref : (R1, K2+2)   f32   [w3 taps | block-1 folded bias | BN3 bias]
    wrow = wrow_ref[...]

    # ---- block 1: one im2col MXU matmul (conv1 + spatial dw-conv + BN1/BN2) ----
    h2 = jnp.dot(wmat_ref[0:R1, 0:BCK1], xcol_ref[...],
                 preferred_element_type=jnp.float32)             # (R1, TO1)
    h2 = _elu(h2 + wrow[:, K2:K2 + 1])                           # folded bias + ELU

    # ---- AvgPool(1,4) + block-2 zero-pad fused as a precomputed pooling matmul ----
    ppad = jnp.dot(h2.astype(jnp.bfloat16),
                   wmat_ref[POOL1_R0:POOL1_R0 + TO1, 0:TPAD2],
                   preferred_element_type=jnp.float32)           # (R1, TPAD2)

    # ---- block 2: depthwise temporal conv (K2 taps, VPU; cheap, left unrolled) ----
    h3 = jnp.zeros((R1, TO2), jnp.float32)
    for k in range(K2):
        h3 = h3 + wrow[:, k:k + 1] * ppad[:, k:k + TO2]

    # ---- pointwise conv with BN3 scale folded (MXU) + bias + ELU ----
    h4 = jnp.dot(wmat_ref[W4_R0:W4_R0 + R2, 0:R1], h3.astype(jnp.bfloat16),
                 preferred_element_type=jnp.float32)             # (R2, TO2)
    h4 = _elu(h4 + wrow[0:R2, K2 + 1:K2 + 2])

    # ---- classifier: AvgPool(1,8)+flatten+Linear folded into wcls rows ----
    # Per class: elementwise product, lane reduce over time, then sum each batch's
    # F2 rows via a sublane-tile-aligned (R2,TO2)->(B,F2,TO2) split (no MXU pass,
    # no width-1 column concat over R2 rows).
    cols = []
    for n in range(NCLS):
        wc = wmat_ref[WC_R0 + n * R2: WC_R0 + (n + 1) * R2, 0:TO2].astype(jnp.float32)
        pn = (wc * h4).reshape(B, F2, TO2)                       # F2 == sublane tile
        sn = jnp.sum(jnp.sum(pn, axis=2, keepdims=True), axis=1)  # (B, 1)
        cols.append(sn)
    logits = jnp.concatenate(cols, axis=1)                       # (B, NCLS)

    # Softmax layer followed by F.softmax, exactly as in forward().
    out_ref[...] = _softmax(_softmax(logits))


# ------------------------------ wrapper (glue) ------------------------------
@jax.jit
def eegnet_forward(x, params):
    """x: (B, C, T) float32 (3-D eeg -> unsqueeze(1) -> NCHW (B,1,C,T) in torch)."""
    xpad = jnp.pad(x.astype(jnp.float32), ((0, 0), (0, 0), (PAD1, PAD1)))   # (B,C,TP1)
    # im2col: rows indexed (b, c, k) -> matches W1comb column layout.
    patches = jnp.stack([xpad[:, :, k:k + TO1] for k in range(K1)], axis=2)  # (B,C,K1,TO1)
    xcol = patches.reshape(BCK1, TO1).astype(jnp.bfloat16)

    vmem = pl.BlockSpec(memory_space=pltpu.MemorySpace.VMEM)
    probs = pl.pallas_call(
        eegnet_fused_kernel,
        out_shape=jax.ShapeDtypeStruct((B, NCLS), jnp.float32),
        in_specs=[vmem, vmem, vmem],
        out_specs=vmem,
    )(xcol, params["wmat"], params["wrow"])
    return probs


# ------------------------------ params & packing ------------------------------
def make_params(key):
    ks = jax.random.split(key, 8)

    def bn_params(k, n):
        # eval-mode BatchNorm with non-trivial (as-if-trained) stats so the
        # bias/scale folding is actually exercised by the reference check.
        k1, k2, k3, k4 = jax.random.split(k, 4)
        gamma = 1.0 + 0.1 * jax.random.normal(k1, (n,), jnp.float32)
        beta = 0.1 * jax.random.normal(k2, (n,), jnp.float32)
        mean = 0.1 * jax.random.normal(k3, (n,), jnp.float32)
        var = 1.0 + 0.1 * jax.random.uniform(k4, (n,), jnp.float32)
        scale = gamma / jnp.sqrt(var + BN_EPS)
        return scale, beta - mean * scale

    # Conv2d(1, F1, (1, K1)) weight (F1,1,1,K1) -> (F1, K1)
    w1 = jax.random.normal(ks[0], (F1, K1), jnp.float32) * 0.2
    s1, be1 = bn_params(ks[1], F1)
    # Conv2dWithConstraint(F1, F1*D, (C,1), groups=F1) weight -> (F1*D, C); renorm p=2,maxnorm=1
    w2 = jax.random.normal(ks[2], (F1D, C), jnp.float32) * 0.5
    nrm = jnp.sqrt(jnp.sum(w2 * w2, axis=1, keepdims=True))
    w2 = w2 * jnp.where(nrm > 1.0, 1.0 / (nrm + 1e-7), 1.0)
    s2, be2 = bn_params(ks[3], F1D)
    # block2 depthwise temporal conv weight -> (F1*D, K2)
    w3 = jax.random.normal(ks[4], (F1D, K2), jnp.float32) * 0.2
    # pointwise Conv2d(F1*D, F2, 1) weight -> (F2, F1D)
    w4 = jax.random.normal(ks[5], (F2, F1D), jnp.float32) * 0.2
    s3, be3 = bn_params(ks[6], F2)
    # classifier Linear (xavier_uniform, bias=False): (NCLS, FLAT)
    bound = float(np.sqrt(6.0 / (FLAT + NCLS)))
    wfc = jax.random.uniform(ks[7], (NCLS, FLAT), jnp.float32, -bound, bound)

    # ---------------- fold & pack for the fused kernel ----------------
    fidx = np.arange(F1D) // D
    s1n, be1n = np.asarray(s1), np.asarray(be1)
    s2n, be2n = np.asarray(s2), np.asarray(be2)
    s3n, be3n = np.asarray(s3), np.asarray(be3)
    w1n, w2n, w3n, w4n, wfcn = map(np.asarray, (w1, w2, w3, w4, wfc))

    # BN1*BN2-scaled temporal taps + folded block-1 bias.
    w1taps = (s2n[:, None] * s1n[fidx][:, None]) * w1n[fidx, :]            # (F1D, K1)
    bias12 = s2n * be1n[fidx] * w2n.sum(axis=1) + be2n                     # (F1D,)

    # im2col-combined block-1 weight (spatial x temporal), block-diag over batch.
    comb = np.einsum('dc,dk->dck', w2n, w1taps).reshape(F1D, C * K1)       # (F1D, C*K1)
    W1comb = np.zeros((R1, BCK1), np.float32)
    for b in range(B):
        W1comb[b * F1D:(b + 1) * F1D, b * C * K1:(b + 1) * C * K1] = comb

    # AvgPool(1,4) + block-2 zero-padding fused as one constant matrix (floor mode).
    pool1 = np.zeros((TO1, TPAD2), np.float32)
    for j in range(TPOOL1):
        pool1[4 * j:4 * j + 4, PAD2 + j] = 0.25

    # Pointwise conv with BN3 scale folded, block-diag over batch.
    w4f = s3n[:, None] * w4n
    w4blk = np.zeros((R2, R1), np.float32)
    for b in range(B):
        w4blk[b * F2:(b + 1) * F2, b * F1D:(b + 1) * F1D] = w4f

    # Classifier with AvgPool(1,8) folded (floor mode), tiled over batch rows,
    # stacked class-major so the kernel slices it at static 16-row offsets.
    pool2 = np.zeros((TO2, TPOOL2), np.float32)
    for j in range(TPOOL2):
        pool2[8 * j:8 * j + 8, j] = 0.125
    wfc3 = wfcn.reshape(NCLS, F2, TPOOL2)
    wcls = np.einsum('nqj,tj->nqt', wfc3, pool2)                           # (NCLS, F2, TO2)
    wcls_rows = np.tile(wcls, (1, B, 1)).reshape(NCLS * R2, TO2)           # (NCLS*R2, TO2)

    # ---- slab 1: bf16 matrices (MXU + classifier), 16-row-aligned sections ----
    wmat = np.zeros((WMAT_ROWS, WMAT_COLS), np.float32)
    wmat[0:R1, :] = W1comb
    wmat[POOL1_R0:POOL1_R0 + TO1, 0:TPAD2] = pool1
    wmat[W4_R0:W4_R0 + R2, 0:R1] = w4blk
    wmat[WC_R0:WC_R0 + NCLS * R2, 0:TO2] = wcls_rows

    # ---- slab 2: f32 per-row VPU data (block-2 taps + folded biases) ----
    wrow = np.zeros((R1, K2 + 2), np.float32)
    wrow[:, 0:K2] = np.tile(w3n, (B, 1))
    wrow[:, K2] = np.tile(bias12, B)
    wrow[0:R2, K2 + 1] = np.tile(be3n, B)

    packed = dict(wmat=jnp.asarray(wmat, dtype=jnp.bfloat16),
                  wrow=jnp.asarray(wrow, dtype=jnp.float32))
    raw = dict(w1=w1, s1=s1, be1=be1, w2=w2, s2=s2, be2=be2,
               w3=w3, w4=w4, s3=s3, be3=be3, wfc=wfc)
    return packed, raw


# --------------------- pure-JAX reference (correctness check) ---------------------
def eegnet_reference(x, raw):
    fidx = np.arange(F1D) // D
    xpad = jnp.pad(x.astype(jnp.float32), ((0, 0), (0, 0), (PAD1, PAD1)))
    patches = jnp.stack([xpad[:, :, k:k + TO1] for k in range(K1)], axis=2)   # (B,C,K1,TO1)
    y1 = jnp.einsum('fk,bckt->bfct', raw['w1'], patches)                      # conv1
    y1 = raw['s1'][None, :, None, None] * y1 + raw['be1'][None, :, None, None]
    z = jnp.einsum('dc,bdct->bdt', raw['w2'], y1[:, fidx, :, :])              # spatial dw conv
    z = raw['s2'][None, :, None] * z + raw['be2'][None, :, None]
    z = jax.nn.elu(z)
    zp = z[:, :, :4 * TPOOL1].reshape(B, F1D, TPOOL1, 4).mean(axis=3)         # AvgPool(1,4)
    zpp = jnp.pad(zp, ((0, 0), (0, 0), (PAD2, PAD2)))
    pat2 = jnp.stack([zpp[:, :, k:k + TO2] for k in range(K2)], axis=3)       # (B,F1D,TO2,K2)
    h3 = jnp.einsum('dk,bdtk->bdt', raw['w3'], pat2)                          # dw temporal conv
    p = jnp.einsum('qd,bdt->bqt', raw['w4'], h3)                              # pointwise conv
    p = raw['s3'][None, :, None] * p + raw['be3'][None, :, None]
    p = jax.nn.elu(p)
    pp = p[:, :, :8 * TPOOL2].reshape(B, F2, TPOOL2, 8).mean(axis=3)          # AvgPool(1,8)
    logits = pp.reshape(B, FLAT) @ raw['wfc'].T
    return jax.nn.softmax(jax.nn.softmax(logits, axis=1), axis=1)


if __name__ == "__main__":
    key = jax.random.PRNGKey(0)
    kx, kp, kl = jax.random.split(key, 3)
    params, raw = make_params(kp)
    x = jax.random.normal(kx, (B, C, T), jnp.float32)         # eeg (B, channels, time)
    labels = jax.random.randint(kl, (B,), 0, NCLS)

    probs = jax.block_until_ready(eegnet_forward(x, params))
    ref = jax.block_until_ready(eegnet_reference(x, raw))

    # CrossEntropyLoss(reduction='mean') applied to the (double-softmaxed) outputs,
    # exactly as forward() does (host glue, not the hot path).
    logp = jax.nn.log_softmax(probs, axis=1)
    loss = -jnp.mean(logp[jnp.arange(B), labels])
    loss = jax.block_until_ready(loss)

    assert probs.shape == (B, NCLS)
    assert bool(jnp.all(jnp.isfinite(probs))) and bool(jnp.isfinite(loss))
    assert bool(jnp.allclose(jnp.sum(probs, axis=1), 1.0, atol=1e-5))
    assert bool(jnp.allclose(probs, ref, atol=3e-2)), (probs, ref)
    print("KERNEL_OK")
</pallas_src>

<mosaic_0001>
module attributes {stable_mosaic.version = 11 : i64} {
  func.func @eegnet_fused_kernel(%arg0: memref<256x65xbf16, #tpu.memory_space<vmem>>, %arg1: memref<160x256xbf16, #tpu.memory_space<vmem>>, %arg2: memref<32x10xf32, #tpu.memory_space<vmem>>, %arg3: memref<2x2xf32, #tpu.memory_space<vmem>>) attributes {dimension_semantics = [], scalar_prefetch = 0 : i64, scratch_operands = 0 : i64, tpu.core_type = #tpu.core_type<tc>} {
    %c0 = arith.constant 0 : index
    %c0_0 = arith.constant 0 : index
    %0 = vector.load %arg2[%c0, %c0_0] : memref<32x10xf32, #tpu.memory_space<vmem>>, vector<32x10xf32>
    %c0_1 = arith.constant 0 : index
    %c0_2 = arith.constant 0 : index
    %1 = vector.load %arg1[%c0_1, %c0_2] : memref<160x256xbf16, #tpu.memory_space<vmem>>, vector<32x256xbf16>
    %c0_3 = arith.constant 0 : index
    %c0_4 = arith.constant 0 : index
    %2 = vector.load %arg0[%c0_3, %c0_4] : memref<256x65xbf16, #tpu.memory_space<vmem>>, vector<256x65xbf16>
    %cst = arith.constant dense<0.000000e+00> : vector<32x65xf32>
    %3 = tpu.matmul %1, %2, %cst {dimension_numbers = #tpu.dot_dimension_numbers<[1], [0], [0], [1], [0, 0, 1, 1], [], []>} : vector<32x256xbf16>, vector<256x65xbf16>, vector<32x65xf32> -> vector<32x65xf32>
    %4 = vector.extract_strided_slice %0 {offsets = [0, 8], sizes = [32, 1], strides = [1, 1]} : vector<32x10xf32> to vector<32x1xf32>
    %5 = vector.broadcast %4 : vector<32x1xf32> to vector<32x65xf32>
    %6 = arith.addf %3, %5 : vector<32x65xf32>
    %cst_5 = arith.constant 0.000000e+00 : f32
    %7 = vector.broadcast %cst_5 : f32 to vector<32x65xf32>
    %8 = arith.cmpf ogt, %6, %7 : vector<32x65xf32>
    %cst_6 = arith.constant 0.000000e+00 : f32
    %9 = vector.broadcast %cst_6 : f32 to vector<32x65xf32>
    %10 = arith.minimumf %6, %9 : vector<32x65xf32>
    %11 = math.exp %10 : vector<32x65xf32>
    %cst_7 = arith.constant 1.000000e+00 : f32
    %12 = vector.broadcast %cst_7 : f32 to vector<32x65xf32>
    %13 = arith.subf %11, %12 : vector<32x65xf32>
    %14 = arith.select %8, %6, %13 : vector<32x65xi1>, vector<32x65xf32>
    %15 = arith.truncf %14 : vector<32x65xf32> to vector<32x65xbf16>
    %c32 = arith.constant 32 : index
    %c0_8 = arith.constant 0 : index
    %16 = vector.load %arg1[%c32, %c0_8] : memref<160x256xbf16, #tpu.memory_space<vmem>>, vector<65x24xbf16>
    %cst_9 = arith.constant dense<0.000000e+00> : vector<32x24xf32>
    %17 = tpu.matmul %15, %16, %cst_9 {dimension_numbers = #tpu.dot_dimension_numbers<[1], [0], [0], [1], [0, 0, 1, 1], [], []>} : vector<32x65xbf16>, vector<65x24xbf16>, vector<32x24xf32> -> vector<32x24xf32>
    %cst_10 = arith.constant 0.000000e+00 : f32
    %18 = vector.broadcast %cst_10 : f32 to vector<32x17xf32>
    %19 = vector.extract_strided_slice %0 {offsets = [0, 0], sizes = [32, 1], strides = [1, 1]} : vector<32x10xf32> to vector<32x1xf32>
    %20 = vector.extract_strided_slice %17 {offsets = [0, 0], sizes = [32, 17], strides = [1, 1]} : vector<32x24xf32> to vector<32x17xf32>
    %21 = vector.broadcast %19 : vector<32x1xf32> to vector<32x17xf32>
    %22 = arith.mulf %21, %20 : vector<32x17xf32>
    %23 = arith.addf %18, %22 : vector<32x17xf32>
    %24 = vector.extract_strided_slice %0 {offsets = [0, 1], sizes = [32, 1], strides = [1, 1]} : vector<32x10xf32> to vector<32x1xf32>
    %25 = vector.extract_strided_slice %17 {offsets = [0, 1], sizes = [32, 17], strides = [1, 1]} : vector<32x24xf32> to vector<32x17xf32>
    %26 = vector.broadcast %24 : vector<32x1xf32> to vector<32x17xf32>
    %27 = arith.mulf %26, %25 : vector<32x17xf32>
    %28 = arith.addf %23, %27 : vector<32x17xf32>
    %29 = vector.extract_strided_slice %0 {offsets = [0, 2], sizes = [32, 1], strides = [1, 1]} : vector<32x10xf32> to vector<32x1xf32>
    %30 = vector.extract_strided_slice %17 {offsets = [0, 2], sizes = [32, 17], strides = [1, 1]} : vector<32x24xf32> to vector<32x17xf32>
    %31 = vector.broadcast %29 : vector<32x1xf32> to vector<32x17xf32>
    %32 = arith.mulf %31, %30 : vector<32x17xf32>
    %33 = arith.addf %28, %32 : vector<32x17xf32>
    %34 = vector.extract_strided_slice %0 {offsets = [0, 3], sizes = [32, 1], strides = [1, 1]} : vector<32x10xf32> to vector<32x1xf32>
    %35 = vector.extract_strided_slice %17 {offsets = [0, 3], sizes = [32, 17], strides = [1, 1]} : vector<32x24xf32> to vector<32x17xf32>
    %36 = vector.broadcast %34 : vector<32x1xf32> to vector<32x17xf32>
    %37 = arith.mulf %36, %35 : vector<32x17xf32>
    %38 = arith.addf %33, %37 : vector<32x17xf32>
    %39 = vector.extract_strided_slice %0 {offsets = [0, 4], sizes = [32, 1], strides = [1, 1]} : vector<32x10xf32> to vector<32x1xf32>
    %40 = vector.extract_strided_slice %17 {offsets = [0, 4], sizes = [32, 17], strides = [1, 1]} : vector<32x24xf32> to vector<32x17xf32>
    %41 = vector.broadcast %39 : vector<32x1xf32> to vector<32x17xf32>
    %42 = arith.mulf %41, %40 : vector<32x17xf32>
    %43 = arith.addf %38, %42 : vector<32x17xf32>
    %44 = vector.extract_strided_slice %0 {offsets = [0, 5], sizes = [32, 1], strides = [1, 1]} : vector<32x10xf32> to vector<32x1xf32>
    %45 = vector.extract_strided_slice %17 {offsets = [0, 5], sizes = [32, 17], strides = [1, 1]} : vector<32x24xf32> to vector<32x17xf32>
    %46 = vector.broadcast %44 : vector<32x1xf32> to vector<32x17xf32>
    %47 = arith.mulf %46, %45 : vector<32x17xf32>
    %48 = arith.addf %43, %47 : vector<32x17xf32>
    %49 = vector.extract_strided_slice %0 {offsets = [0, 6], sizes = [32, 1], strides = [1, 1]} : vector<32x10xf32> to vector<32x1xf32>
    %50 = vector.extract_strided_slice %17 {offsets = [0, 6], sizes = [32, 17], strides = [1, 1]} : vector<32x24xf32> to vector<32x17xf32>
    %51 = vector.broadcast %49 : vector<32x1xf32> to vector<32x17xf32>
    %52 = arith.mulf %51, %50 : vector<32x17xf32>
    %53 = arith.addf %48, %52 : vector<32x17xf32>
    %54 = vector.extract_strided_slice %0 {offsets = [0, 7], sizes = [32, 1], strides = [1, 1]} : vector<32x10xf32> to vector<32x1xf32>
    %55 = vector.extract_strided_slice %17 {offsets = [0, 7], sizes = [32, 17], strides = [1, 1]} : vector<32x24xf32> to vector<32x17xf32>
    %56 = vector.broadcast %54 : vector<32x1xf32> to vector<32x17xf32>
    %57 = arith.mulf %56, %55 : vector<32x17xf32>
    %58 = arith.addf %53, %57 : vector<32x17xf32>
    %c112 = arith.constant 112 : index
    %c0_11 = arith.constant 0 : index
    %59 = vector.load %arg1[%c112, %c0_11] : memref<160x256xbf16, #tpu.memory_space<vmem>>, vector<16x32xbf16>
    %60 = arith.truncf %58 : vector<32x17xf32> to vector<32x17xbf16>
    %cst_12 = arith.constant dense<0.000000e+00> : vector<16x17xf32>
    %61 = tpu.matmul %59, %60, %cst_12 {dimension_numbers = #tpu.dot_dimension_numbers<[1], [0], [0], [1], [0, 0, 1, 1], [], []>} : vector<16x32xbf16>, vector<32x17xbf16>, vector<16x17xf32> -> vector<16x17xf32>
    %62 = vector.extract_strided_slice %0 {offsets = [0, 9], sizes = [16, 1], strides = [1, 1]} : vector<32x10xf32> to vector<16x1xf32>
    %63 = vector.broadcast %62 : vector<16x1xf32> to vector<16x17xf32>
    %64 = arith.addf %61, %63 : vector<16x17xf32>
    %cst_13 = arith.constant 0.000000e+00 : f32
    %65 = vector.broadcast %cst_13 : f32 to vector<16x17xf32>
    %66 = arith.cmpf ogt, %64, %65 : vector<16x17xf32>
    %cst_14 = arith.constant 0.000000e+00 : f32
    %67 = vector.broadcast %cst_14 : f32 to vector<16x17xf32>
    %68 = arith.minimumf %64, %67 : vector<16x17xf32>
    %69 = math.exp %68 : vector<16x17xf32>
    %cst_15 = arith.constant 1.000000e+00 : f32
    %70 = vector.broadcast %cst_15 : f32 to vector<16x17xf32>
    %71 = arith.subf %69, %70 : vector<16x17xf32>
    %72 = arith.select %66, %64, %71 : vector<16x17xi1>, vector<16x17xf32>
    %c128 = arith.constant 128 : index
    %c0_16 = arith.constant 0 : index
    %73 = vector.load %arg1[%c128, %c0_16] : memref<160x256xbf16, #tpu.memory_space<vmem>>, vector<16x17xbf16>
    %74 = arith.extf %73 : vector<16x17xbf16> to vector<16x17xf32>
    %75 = arith.mulf %74, %72 : vector<16x17xf32>
    %76 = vector.shape_cast %75 : vector<16x17xf32> to vector<2x8x17xf32>
    %cst_17 = arith.constant dense<0.000000e+00> : vector<2x8xf32>
    %77 = vector.multi_reduction <add>, %76, %cst_17 [2] : vector<2x8x17xf32> to vector<2x8xf32>
    %78 = vector.shape_cast %77 : vector<2x8xf32> to vector<2x8x1xf32>
    %cst_18 = arith.constant dense<0.000000e+00> : vector<2x1xf32>
    %79 = vector.multi_reduction <add>, %78, %cst_18 [1] : vector<2x8x1xf32> to vector<2x1xf32>
    %c144 = arith.constant 144 : index
    %c0_19 = arith.constant 0 : index
    %80 = vector.load %arg1[%c144, %c0_19] : memref<160x256xbf16, #tpu.memory_space<vmem>>, vector<16x17xbf16>
    %81 = arith.extf %80 : vector<16x17xbf16> to vector<16x17xf32>
    %82 = arith.mulf %81, %72 : vector<16x17xf32>
    %83 = vector.shape_cast %82 : vector<16x17xf32> to vector<2x8x17xf32>
    %cst_20 = arith.constant dense<0.000000e+00> : vector<2x8xf32>
    %84 = vector.multi_reduction <add>, %83, %cst_20 [2] : vector<2x8x17xf32> to vector<2x8xf32>
    %85 = vector.shape_cast %84 : vector<2x8xf32> to vector<2x8x1xf32>
    %cst_21 = arith.constant dense<0.000000e+00> : vector<2x1xf32>
    %86 = vector.multi_reduction <add>, %85, %cst_21 [1] : vector<2x8x1xf32> to vector<2x1xf32>
    %87 = tpu.concatenate %79, %86 in 1 : vector<2x1xf32>, vector<2x1xf32> -> vector<2x2xf32>
    %cst_22 = arith.constant dense<0xFF800000> : vector<2xf32>
    %88 = vector.multi_reduction <maximumf>, %87, %cst_22 [1] : vector<2x2xf32> to vector<2xf32>
    %89 = vector.shape_cast %88 : vector<2xf32> to vector<2x1xf32>
    %90 = vector.broadcast %89 : vector<2x1xf32> to vector<2x2xf32>
    %91 = arith.subf %87, %90 : vector<2x2xf32>
    %92 = math.exp %91 : vector<2x2xf32>
    %cst_23 = arith.constant dense<0.000000e+00> : vector<2xf32>
    %93 = vector.multi_reduction <add>, %92, %cst_23 [1] : vector<2x2xf32> to vector<2xf32>
    %94 = vector.shape_cast %93 : vector<2xf32> to vector<2x1xf32>
    %95 = vector.broadcast %94 : vector<2x1xf32> to vector<2x2xf32>
    %96 = arith.divf %92, %95 : vector<2x2xf32>
    %cst_24 = arith.constant dense<0xFF800000> : vector<2xf32>
    %97 = vector.multi_reduction <maximumf>, %96, %cst_24 [1] : vector<2x2xf32> to vector<2xf32>
    %98 = vector.shape_cast %97 : vector<2xf32> to vector<2x1xf32>
    %99 = vector.broadcast %98 : vector<2x1xf32> to vector<2x2xf32>
    %100 = arith.subf %96, %99 : vector<2x2xf32>
    %101 = math.exp %100 : vector<2x2xf32>
    %cst_25 = arith.constant dense<0.000000e+00> : vector<2xf32>
    %102 = vector.multi_reduction <add>, %101, %cst_25 [1] : vector<2x2xf32> to vector<2xf32>
    %103 = vector.shape_cast %102 : vector<2xf32> to vector<2x1xf32>
    %104 = vector.broadcast %103 : vector<2x1xf32> to vector<2x2xf32>
    %105 = arith.divf %101, %104 : vector<2x2xf32>
    %c0_26 = arith.constant 0 : index
    %c0_27 = arith.constant 0 : index
    %106 = vector.load %arg3[%c0_26, %c0_27] : memref<2x2xf32, #tpu.memory_space<vmem>>, vector<2x2xf32>
    tpu.vector_store %arg3[%c0_26, %c0_27], %105 {strides = array<i32>} : memref<2x2xf32, #tpu.memory_space<vmem>>, vector<2x2xf32>,
    return
  }
}

</mosaic_0001>

<llo_original>
// kernel: eegnet_forward.1
$region0: #{eegnet_forward.1}
  #allocation0 [shape = 'u32[]', space=smem, size = 0x4, offset = 0x4, fixed_abs, tag = 'smem constant byte address 0x4 - core index']
  #allocation1 [shape = 'u32[144,128]{1,0:T(1,128)}', space=vmem, size = 0x12000, scoped, tag = 'internal scratch']
  %s0 = inlined_call_operand.vmem [shape: bf16[256,65], index: 0, kind: input, shape index: {}]
  %s1 = inlined_call_operand.vmem [shape: bf16[160,256], index: 1, kind: input, shape index: {}]
  %s2 = inlined_call_operand.vmem [shape: f32[32,10], index: 2, kind: input, shape index: {}]
  %s3 = inlined_call_operand.hbm [shape: f32[2,2], index: 3, kind: output, shape index: {}]
  %s4 = sld [smem:[#allocation0]]
  $region22: #{eegnet_forward.1} parent=0
    _
  %s6 = ssub.s32 1, %s4
  %s7 = scalar_select 0, %s6, %s4
  $region1: #{eegnet_forward.1} parent=0
    #allocation2 [shape = 'u8[1024]{0}', space=vmem, size = 0x400, scoped, tag = 'output window, operand 0, single buffered']
    #allocation3 [shape = 's32[1]{0}', space=sflag, size = 0x4, scoped, tag = 'scoped memory for eegnet_forward.1']
    %8 = vsyncpa [#allocation3], 0
    // Predicated region
    $region2: #{eegnet_forward.1} parent=1 // pred_check
      _
    $region3: #{eegnet_forward.1} parent=1 // pred_check_branch
      %10 = sbr.rel (0) target = $region5
    $region4: #{eegnet_forward.1} parent=1 // pred_region
      _
    $region5: #{eegnet_forward.1} parent=1 // pred_fallthru
      _
    // Predicated region
    $region6: #{eegnet_forward.1} parent=1 // pred_check
      _
    $region7: #{eegnet_forward.1} parent=1 // pred_check_branch
      %12 = sbr.rel (0) target = $region9
    $region8: #{eegnet_forward.1} parent=1 // pred_region
      _
    $region9: #{eegnet_forward.1} parent=1 // pred_fallthru
      _
    // Predicated region
    $region10: #{eegnet_forward.1} parent=1 // pred_check
      _
    $region11: #{eegnet_forward.1} parent=1 // pred_check_branch
      %14 = sbr.rel (0) target = $region13
    $region12: #{eegnet_forward.1} parent=1 // pred_region
      _
    $region13: #{eegnet_forward.1} parent=1 // pred_fallthru
      _
    %v16 = vld [vmem:[%s2] sm:$0xff]
    %v17 = vld [vmem:[%s2 + $0x8] sm:$0xff]
    %v18 = vld [vmem:[%s2 + $0x10] sm:$0xff]
    %v19 = vld [vmem:[%s2 + $0x18] sm:$0xff]
    %v20 = vld [vmem:[%s1] sm:$0xff]
    %v21 = vld [vmem:[%s1 + $0x8] sm:$0xff]
    %v22 = vld [vmem:[%s1 + $0x10] sm:$0xff]
    %v23 = vld [vmem:[%s1 + $0x18] sm:$0xff]
    %v24 = vld [vmem:[%s0] sm:$0xf]
    %v25 = vld [vmem:[%s0 + $0x4] sm:$0xf]
    %v26 = vld [vmem:[%s0 + $0x8] sm:$0xf]
    %v27 = vld [vmem:[%s0 + $0xc] sm:$0xf]
    %v28 = vld [vmem:[%s0 + $0x10] sm:$0xf]
    %v29 = vld [vmem:[%s0 + $0x14] sm:$0xf]
    %v30 = vld [vmem:[%s0 + $0x18] sm:$0xf]
    %v31 = vld [vmem:[%s0 + $0x1c] sm:$0xf]
    %v32 = vld [vmem:[%s0 + $0x20] sm:$0xf]
    %v33 = vld [vmem:[%s0 + $0x24] sm:$0xf]
    %v34 = vld [vmem:[%s0 + $0x28] sm:$0xf]
    %v35 = vld [vmem:[%s0 + $0x2c] sm:$0xf]
    %v36 = vld [vmem:[%s0 + $0x30] sm:$0xf]
    %v37 = vld [vmem:[%s0 + $0x34] sm:$0xf]
    %v38 = vld [vmem:[%s0 + $0x38] sm:$0xf]
    %v39 = vld [vmem:[%s0 + $0x3c] sm:$0xf]
    %v40 = vld [vmem:[%s0 + $0x40] sm:$0xf]
    %v41 = vld [vmem:[%s0 + $0x44] sm:$0xf]
    %v42 = vld [vmem:[%s0 + $0x48] sm:$0xf]
    %v43 = vld [vmem:[%s0 + $0x4c] sm:$0xf]
    %v44 = vld [vmem:[%s0 + $0x50] sm:$0xf]
    %v45 = vld [vmem:[%s0 + $0x54] sm:$0xf]
    %v46 = vld [vmem:[%s0 + $0x58] sm:$0xf]
    %v47 = vld [vmem:[%s0 + $0x5c] sm:$0xf]
    %v48 = vld [vmem:[%s0 + $0x60] sm:$0xf]
    %v49 = vld [vmem:[%s0 + $0x64] sm:$0xf]
    %v50 = vld [vmem:[%s0 + $0x68] sm:$0xf]
    %v51 = vld [vmem:[%s0 + $0x6c] sm:$0xf]
    %v52 = vld [vmem:[%s0 + $0x70] sm:$0xf]
    %v53 = vld [vmem:[%s0 + $0x74] sm:$0xf]
    %v54 = vld [vmem:[%s0 + $0x78] sm:$0xf]
    %v55 = vld [vmem:[%s0 + $0x7c] sm:$0xf]
    %57 = vset.pattern.permute.xlu0 8
    %58 = vperm.xlu0 %57, %v16
    %v59 = vpop.permute.xlu0 %58
    %62 = vset.pattern.permute.xlu0 8
    %63 = vperm.xlu0 %62, %v17
    %v64 = vpop.permute.xlu0 %63
    %67 = vset.pattern.permute.xlu0 8
    %68 = vperm.xlu0 %67, %v18
    %v69 = vpop.permute.xlu0 %68
    %72 = vset.pattern.permute.xlu0 8
    %73 = vperm.xlu0 %72, %v19
    %v74 = vpop.permute.xlu0 %73
    %v80 = vunpack.c.l.b16 %v20
    %v81 = vunpack.c.h.b16 %v20
    %v82 = vunpack.c.l.b16 %v21
    %v83 = vunpack.c.h.b16 %v21
    %v84 = vunpack.c.l.b16 %v22
    %v85 = vunpack.c.h.b16 %v22
    %v86 = vunpack.c.l.b16 %v23
    %v87 = vunpack.c.h.b16 %v23
    %v88 = vpack.c.b16 %v82, %v80
    %v89 = vpack.c.b16 %v83, %v81
    %v90 = vpack.c.b16 %v86, %v84
    %v91 = vpack.c.b16 %v87, %v85
    %v128 = vunpack.c.l.b16 %v24
    %v129 = vunpack.c.l.b16 %v25
    %v130 = vunpack.c.l.b16 %v26
    %v131 = vunpack.c.l.b16 %v27
    %v132 = vunpack.c.l.b16 %v28
    %v133 = vunpack.c.l.b16 %v29
    %v134 = vunpack.c.l.b16 %v30
    %v135 = vunpack.c.l.b16 %v31
    %v136 = vunpack.c.l.b16 %v32
    %v137 = vunpack.c.l.b16 %v33
    %v138 = vunpack.c.l.b16 %v34
    %v139 = vunpack.c.l.b16 %v35
    %v140 = vunpack.c.l.b16 %v36
    %v141 = vunpack.c.l.b16 %v37
    %v142 = vunpack.c.l.b16 %v38
    %v143 = vunpack.c.l.b16 %v39
    %v144 = vunpack.c.l.b16 %v40
    %v145 = vunpack.c.l.b16 %v41
    %v146 = vunpack.c.l.b16 %v42
    %v147 = vunpack.c.l.b16 %v43
    %v148 = vunpack.c.l.b16 %v44
    %v149 = vunpack.c.l.b16 %v45
    %v150 = vunpack.c.l.b16 %v46
    %v151 = vunpack.c.l.b16 %v47
    %v152 = vunpack.c.l.b16 %v48
    %v153 = vunpack.c.l.b16 %v49
    %v154 = vunpack.c.l.b16 %v50
    %v155 = vunpack.c.l.b16 %v51
    %v156 = vunpack.c.l.b16 %v52
    %v157 = vunpack.c.l.b16 %v53
    %v158 = vunpack.c.l.b16 %v54
    %v159 = vunpack.c.l.b16 %v55
    %v160 = vpack.c.b16 %v129, %v128
    %v161 = vpack.c.b16 %v131, %v130
    %v162 = vpack.c.b16 %v133, %v132
    %v163 = vpack.c.b16 %v135, %v134
    %v164 = vpack.c.b16 %v137, %v136
    %v165 = vpack.c.b16 %v139, %v138
    %v166 = vpack.c.b16 %v141, %v140
    %v167 = vpack.c.b16 %v143, %v142
    %v168 = vpack.c.b16 %v145, %v144
    %v169 = vpack.c.b16 %v147, %v146
    %v170 = vpack.c.b16 %v149, %v148
    %v171 = vpack.c.b16 %v151, %v150
    %v172 = vpack.c.b16 %v153, %v152
    %v173 = vpack.c.b16 %v155, %v154
    %v174 = vpack.c.b16 %v157, %v156
    %v175 = vpack.c.b16 %v159, %v158
    %192 = vmatprep.subr.bf16.mxu0 0
    %193 = vmatpush1.bf16.msra.mxu0 %v160
    %194 = vmatprep.subr.bf16.mxu0 0
    %195 = vmatpush1.bf16.msra.mxu0 %v161
    %196 = vmatprep.subr.bf16.mxu0 0
    %197 = vmatpush1.bf16.msra.mxu0 %v162
    %198 = vmatprep.subr.bf16.mxu0 0
    %199 = vmatpush1.bf16.msra.mxu0 %v163
    %200 = vmatprep.subr.bf16.mxu0 0
    %201 = vmatpush1.bf16.msra.mxu0 %v164
    %202 = vmatprep.subr.bf16.mxu0 0
    %203 = vmatpush1.bf16.msra.mxu0 %v165
    %204 = vmatprep.subr.bf16.mxu0 0
    %205 = vmatpush1.bf16.msra.mxu0 %v166
    %206 = vmatprep.subr.bf16.mxu0 0
    %207 = vmatpush1.bf16.msra.mxu0 %v167
    %208 = vmatprep.subr.bf16.mxu0 0
    %209 = vmatpush1.bf16.msra.mxu0 %v168
    %210 = vmatprep.subr.bf16.mxu0 0
    %211 = vmatpush1.bf16.msra.mxu0 %v169
    %212 = vmatprep.subr.bf16.mxu0 0
    %213 = vmatpush1.bf16.msra.mxu0 %v170
    %214 = vmatprep.subr.bf16.mxu0 0
    %215 = vmatpush1.bf16.msra.mxu0 %v171
    %216 = vmatprep.subr.bf16.mxu0 0
    %217 = vmatpush1.bf16.msra.mxu0 %v172
    %218 = vmatprep.subr.bf16.mxu0 0
    %219 = vmatpush1.bf16.msra.mxu0 %v173
    %220 = vmatprep.subr.bf16.mxu0 0
    %221 = vmatpush1.bf16.msra.mxu0 %v174
    %222 = vmatprep.subr.bf16.mxu0 0
    %223 = vmatpush1.bf16.msra.mxu0 %v175
    %224 = vmatprep.mubr.bf16.mxu0 %v89
    %225 = vmatmul.mubr.bf16.gmra.mrb[0].mxu0 %v88
    %v226 = vpop.f32.mrb[0].mxu0
    %v227 = vadd.f32 %v59, %v226
    %v228 = vpop.f32.mrb[0].mxu0
    %v229 = vpop.f32.mrb[0].mxu0
    %v230 = vadd.f32 %v64, %v229
    %v231 = vpop.f32.mrb[0].mxu0
    %232 = vmatprep.mubr.bf16.mxu0 %v91
    %233 = vmatmul.mubr.bf16.gmra.mrb[0].mxu0 %v90
    %v234 = vpop.f32.mrb[0].mxu0
    %v235 = vadd.f32 %v69, %v234
    %v236 = vpop.f32.mrb[0].mxu0
    %v237 = vpop.f32.mrb[0].mxu0
    %v238 = vadd.f32 %v74, %v237
    %v239 = vpop.f32.mrb[0].mxu0
    %240 = vdwg.mxu0
    %vm241 = vcmp.gt.f32.partialorder %v227, 0.0
    %vm242 = vcmp.gt.f32.partialorder %v230, 0.0
    %vm243 = vcmp.gt.f32.partialorder %v235, 0.0
    %vm244 = vcmp.gt.f32.partialorder %v238, 0.0
    %v245 = vmin.f32 %v227, 0.0
    %v246 = vmin.f32 %v230, 0.0
    %v247 = vmin.f32 %v235, 0.0
    %v248 = vmin.f32 %v238, 0.0
    %v249 = vmul.f32 %v245, 1.442695
    %v250 = vpow.pop %v249
    %v251 = vmul.f32 %v246, 1.442695
    %v252 = vpow.pop %v251
    %v253 = vmul.f32 %v247, 1.442695
    %v254 = vpow.pop %v253
    %v255 = vmul.f32 %v248, 1.442695
    %v256 = vpow.pop %v255
    %v257 = vsub.f32 %v250, 1.0
    %v258 = vsub.f32 %v252, 1.0
    %v259 = vsub.f32 %v254, 1.0
    %v260 = vsub.f32 %v256, 1.0
    %v261 = vsel %vm241, %v227, %v257
    %v262 = vsel %vm242, %v230, %v258
    %v263 = vsel %vm243, %v235, %v259
    %v264 = vsel %vm244, %v238, %v260
    %v265 = vpack.c.bf16 %v262, %v261
    %v266 = vpack.c.bf16 %v264, %v263
    %v267 = vld [vmem:[%s1 + $0x20] sm:$0xf]
    %v268 = vld [vmem:[%s1 + $0x28] sm:$0xf]
    %v269 = vld [vmem:[%s1 + $0x30] sm:$0xf]
    %v270 = vld [vmem:[%s1 + $0x38] sm:$0xf]
    %v271 = vld [vmem:[%s1 + $0x40] sm:$0xf]
    %v272 = vld [vmem:[%s1 + $0x48] sm:$0xf]
    %v273 = vld [vmem:[%s1 + $0x50] sm:$0xf]
    %v274 = vld [vmem:[%s1 + $0x58] sm:$0xf]
    %v275 = vld [vmem:[%s1 + $0x60] sm:$0x1]
    %v285 = vunpack.c.l.b16 %v267
    %v286 = vunpack.c.l.b16 %v268
    %v287 = vunpack.c.l.b16 %v269
    %v288 = vunpack.c.l.b16 %v270
    %v289 = vunpack.c.l.b16 %v271
    %v290 = vunpack.c.l.b16 %v272
    %v291 = vunpack.c.l.b16 %v273
    %v292 = vunpack.c.l.b16 %v274
    %v293 = vunpack.c.l.b16 %v275
    %v294 = vpack.c.b16 %v286, %v285
    %v295 = vpack.c.b16 %v288, %v287
    %v296 = vpack.c.b16 %v290, %v289
    %v297 = vpack.c.b16 %v292, %v291
    %v298 = vpack.c.b16 %v293, %v293
    %vm303 = vcmask 531456
    %v305 = vsel %vm303, %v265, 0
    %v308 = vsel %vm303, %v266, 0
    %vm310 = vcmask 1040384
    %v311 = vsel 0, 4294967295, 65535
    %v312 = vsel %vm310, %v311, 0
    %v314 = vand.u32 %v298, %v312
    %316 = vmatprep.subr.bf16.mxu0 0
    %317 = vmatpush1.bf16.msra.mxu0 %v294
    %318 = vmatprep.subr.bf16.mxu0 0
    %319 = vmatpush1.bf16.msra.mxu0 %v295
    %320 = vmatprep.subr.bf16.mxu0 0
    %321 = vmatpush1.bf16.msra.mxu0 %v296
    %322 = vmatprep.subr.bf16.mxu0 0
    %323 = vmatpush1.bf16.msra.mxu0 %v297
    %324 = vmatprep.subr.bf16.mxu0 0
    %325 = vmatpush1.bf16.msra.mxu0 %v314
    %326 = vmatprep.subr.bf16.mxu0 0
    %327 = vmatpush1.bf16.msra.mxu0 0
    %328 = vmatprep.subr.bf16.mxu0 0
    %329 = vmatpush1.bf16.msra.mxu0 0
    %330 = vmatprep.subr.bf16.mxu0 0
    %331 = vmatpush1.bf16.msra.mxu0 0
    %332 = vmatprep.subr.bf16.mxu0 0
    %333 = vmatpush1.bf16.msra.mxu0 0
    %334 = vmatprep.subr.bf16.mxu0 0
    %335 = vmatpush1.bf16.msra.mxu0 0
    %336 = vmatprep.subr.bf16.mxu0 0
    %337 = vmatpush1.bf16.msra.mxu0 0
    %338 = vmatprep.subr.bf16.mxu0 0
    %339 = vmatpush1.bf16.msra.mxu0 0
    %340 = vmatprep.subr.bf16.mxu0 0
    %341 = vmatpush1.bf16.msra.mxu0 0
    %342 = vmatprep.subr.bf16.mxu0 0
    %343 = vmatpush1.bf16.msra.mxu0 0
    %344 = vmatprep.subr.bf16.mxu0 0
    %345 = vmatpush1.bf16.msra.mxu0 0
    %346 = vmatprep.subr.bf16.mxu0 0
    %347 = vmatpush1.bf16.msra.mxu0 0
    %348 = vmatprep.mubr.bf16.mxu0 0
    %349 = vmatmul.mubr.bf16.gmra.mrb[0].mxu0 %v305
    %v350 = vpop.f32.mrb[0].mxu0
    %v351 = vadd.f32 0.0, %v350
    %v352 = vpop.f32.mrb[0].mxu0
    %v353 = vpop.f32.mrb[0].mxu0
    %v354 = vadd.f32 0.0, %v353
    %v355 = vpop.f32.mrb[0].mxu0
    %356 = vmatprep.mubr.bf16.mxu0 0
    %357 = vmatmul.mubr.bf16.gmra.mrb[0].mxu0 %v308
    %v358 = vpop.f32.mrb[0].mxu0
    %v359 = vadd.f32 0.0, %v358
    %v360 = vpop.f32.mrb[0].mxu0
    %v361 = vpop.f32.mrb[0].mxu0
    %v362 = vadd.f32 0.0, %v361
    %v363 = vpop.f32.mrb[0].mxu0
    %364 = vdwg.mxu0
    %365 = vset.pattern.permute.xlu0 0
    %366 = vperm.xlu0 %365, %v16
    %v367 = vpop.permute.xlu0 %366
    %369 = vset.pattern.permute.xlu0 0
    %370 = vperm.xlu0 %369, %v17
    %v371 = vpop.permute.xlu0 %370
    %373 = vset.pattern.permute.xlu0 0
    %374 = vperm.xlu0 %373, %v18
    %v375 = vpop.permute.xlu0 %374
    %377 = vset.pattern.permute.xlu0 0
    %378 = vperm.xlu0 %377, %v19
    %v379 = vpop.permute.xlu0 %378
    %v381 = vmul.f32 %v367, %v351
    %v382 = vmul.f32 %v371, %v354
    %v383 = vmul.f32 %v375, %v359
    %v384 = vmul.f32 %v379, %v362
    %v385 = vadd.f32 %v381, 0.0
    %v386 = vadd.f32 %v382, 0.0
    %v387 = vadd.f32 %v383, 0.0
    %v388 = vadd.f32 %v384, 0.0
    %389 = vset.pattern.permute.xlu0 1
    %390 = vperm.xlu0 %389, %v16
    %v391 = vpop.permute.xlu0 %390
    %393 = vset.pattern.permute.xlu0 1
    %394 = vperm.xlu0 %393, %v17
    %v395 = vpop.permute.xlu0 %394
    %397 = vset.pattern.permute.xlu0 1
    %398 = vperm.xlu0 %397, %v18
    %v399 = vpop.permute.xlu0 %398
    %401 = vset.pattern.permute.xlu0 1
    %402 = vperm.xlu0 %401, %v19
    %v403 = vpop.permute.xlu0 %402
    %v405 = vmul.f32 %v391, %v351
    %v406 = vmul.f32 %v395, %v354
    %v407 = vmul.f32 %v399, %v359
    %v408 = vmul.f32 %v403, %v362
    %413 = vrot.lane.b32.xlu0 %v405, 127
    %v414 = vpop.permute.xlu0 %413
    %415 = vrot.lane.b32.xlu0 %v406, 127
    %v416 = vpop.permute.xlu0 %415
    %417 = vrot.lane.b32.xlu0 %v407, 127
    %v418 = vpop.permute.xlu0 %417
    %419 = vrot.lane.b32.xlu0 %v408, 127
    %v420 = vpop.permute.xlu0 %419
    %v425 = vadd.f32 %v385, %v414
    %v426 = vadd.f32 %v386, %v416
    %v427 = vadd.f32 %v387, %v418
    %v428 = vadd.f32 %v388, %v420
    %429 = vset.pattern.permute.xlu0 2
    %430 = vperm.xlu0 %429, %v16
    %v431 = vpop.permute.xlu0 %430
    %433 = vset.pattern.permute.xlu0 2
    %434 = vperm.xlu0 %433, %v17
    %v435 = vpop.permute.xlu0 %434
    %437 = vset.pattern.permute.xlu0 2
    %438 = vperm.xlu0 %437, %v18
    %v439 = vpop.permute.xlu0 %438
    %441 = vset.pattern.permute.xlu0 2
    %442 = vperm.xlu0 %441, %v19
    %v443 = vpop.permute.xlu0 %442
    %v445 = vmul.f32 %v431, %v351
    %v446 = vmul.f32 %v435, %v354
    %v447 = vmul.f32 %v439, %v359
    %v448 = vmul.f32 %v443, %v362
    %453 = vrot.lane.b32.xlu0 %v445, 126
    %v454 = vpop.permute.xlu0 %453
    %455 = vrot.lane.b32.xlu0 %v446, 126
    %v456 = vpop.permute.xlu0 %455
    %457 = vrot.lane.b32.xlu0 %v447, 126
    %v458 = vpop.permute.xlu0 %457
    %459 = vrot.lane.b32.xlu0 %v448, 126
    %v460 = vpop.permute.xlu0 %459
    %v465 = vadd.f32 %v425, %v454
    %v466 = vadd.f32 %v426, %v456
    %v467 = vadd.f32 %v427, %v458
    %v468 = vadd.f32 %v428, %v460
    %469 = vset.pattern.permute.xlu0 3
    %470 = vperm.xlu0 %469, %v16
    %v471 = vpop.permute.xlu0 %470
    %473 = vset.pattern.permute.xlu0 3
    %474 = vperm.xlu0 %473, %v17
    %v475 = vpop.permute.xlu0 %474
    %477 = vset.pattern.permute.xlu0 3
    %478 = vperm.xlu0 %477, %v18
    %v479 = vpop.permute.xlu0 %478
    %481 = vset.pattern.permute.xlu0 3
    %482 = vperm.xlu0 %481, %v19
    %v483 = vpop.permute.xlu0 %482
    %v485 = vmul.f32 %v471, %v351
    %v486 = vmul.f32 %v475, %v354
    %v487 = vmul.f32 %v479, %v359
    %v488 = vmul.f32 %v483, %v362
    %493 = vrot.lane.b32.xlu0 %v485, 125
    %v494 = vpop.permute.xlu0 %493
    %495 = vrot.lane.b32.xlu0 %v486, 125
    %v496 = vpop.permute.xlu0 %495
    %497 = vrot.lane.b32.xlu0 %v487, 125
    %v498 = vpop.permute.xlu0 %497
    %499 = vrot.lane.b32.xlu0 %v488, 125
    %v500 = vpop.permute.xlu0 %499
    %v505 = vadd.f32 %v465, %v494
    %v506 = vadd.f32 %v466, %v496
    %v507 = vadd.f32 %v467, %v498
    %v508 = vadd.f32 %v468, %v500
    %509 = vset.pattern.permute.xlu0 4
    %510 = vperm.xlu0 %509, %v16
    %v511 = vpop.permute.xlu0 %510
    %513 = vset.pattern.permute.xlu0 4
    %514 = vperm.xlu0 %513, %v17
    %v515 = vpop.permute.xlu0 %514
    %517 = vset.pattern.permute.xlu0 4
    %518 = vperm.xlu0 %517, %v18
    %v519 = vpop.permute.xlu0 %518
    %521 = vset.pattern.permute.xlu0 4
    %522 = vperm.xlu0 %521, %v19
    %v523 = vpop.permute.xlu0 %522
    %v525 = vmul.f32 %v511, %v351
    %v526 = vmul.f32 %v515, %v354
    %v527 = vmul.f32 %v519, %v359
    %v528 = vmul.f32 %v523, %v362
    %533 = vrot.lane.b32.xlu0 %v525, 124
    %v534 = vpop.permute.xlu0 %533
    %535 = vrot.lane.b32.xlu0 %v526, 124
    %v536 = vpop.permute.xlu0 %535
    %537 = vrot.lane.b32.xlu0 %v527, 124
    %v538 = vpop.permute.xlu0 %537
    %539 = vrot.lane.b32.xlu0 %v528, 124
    %v540 = vpop.permute.xlu0 %539
    %v545 = vadd.f32 %v505, %v534
    %v546 = vadd.f32 %v506, %v536
    %v547 = vadd.f32 %v507, %v538
    %v548 = vadd.f32 %v508, %v540
    %549 = vset.pattern.permute.xlu0 5
    %550 = vperm.xlu0 %549, %v16
    %v551 = vpop.permute.xlu0 %550
    %553 = vset.pattern.permute.xlu0 5
    %554 = vperm.xlu0 %553, %v17
    %v555 = vpop.permute.xlu0 %554
    %557 = vset.pattern.permute.xlu0 5
    %558 = vperm.xlu0 %557, %v18
    %v559 = vpop.permute.xlu0 %558
    %561 = vset.pattern.permute.xlu0 5
    %562 = vperm.xlu0 %561, %v19
    %v563 = vpop.permute.xlu0 %562
    %v565 = vmul.f32 %v551, %v351
    %v566 = vmul.f32 %v555, %v354
    %v567 = vmul.f32 %v559, %v359
    %v568 = vmul.f32 %v563, %v362
    %573 = vrot.lane.b32.xlu0 %v565, 123
    %v574 = vpop.permute.xlu0 %573
    %575 = vrot.lane.b32.xlu0 %v566, 123
    %v576 = vpop.permute.xlu0 %575
    %577 = vrot.lane.b32.xlu0 %v567, 123
    %v578 = vpop.permute.xlu0 %577
    %579 = vrot.lane.b32.xlu0 %v568, 123
    %v580 = vpop.permute.xlu0 %579
    %v585 = vadd.f32 %v545, %v574
    %v586 = vadd.f32 %v546, %v576
    %v587 = vadd.f32 %v547, %v578
    %v588 = vadd.f32 %v548, %v580
    %589 = vset.pattern.permute.xlu0 6
    %590 = vperm.xlu0 %589, %v16
    %v591 = vpop.permute.xlu0 %590
    %593 = vset.pattern.permute.xlu0 6
    %594 = vperm.xlu0 %593, %v17
    %v595 = vpop.permute.xlu0 %594
    %597 = vset.pattern.permute.xlu0 6
    %598 = vperm.xlu0 %597, %v18
    %v599 = vpop.permute.xlu0 %598
    %601 = vset.pattern.permute.xlu0 6
    %602 = vperm.xlu0 %601, %v19
    %v603 = vpop.permute.xlu0 %602
    %v605 = vmul.f32 %v591, %v351
    %v606 = vmul.f32 %v595, %v354
    %v607 = vmul.f32 %v599, %v359
    %v608 = vmul.f32 %v603, %v362
    %613 = vrot.lane.b32.xlu0 %v605, 122
    %v614 = vpop.permute.xlu0 %613
    %615 = vrot.lane.b32.xlu0 %v606, 122
    %v616 = vpop.permute.xlu0 %615
    %617 = vrot.lane.b32.xlu0 %v607, 122
    %v618 = vpop.permute.xlu0 %617
    %619 = vrot.lane.b32.xlu0 %v608, 122
    %v620 = vpop.permute.xlu0 %619
    %v625 = vadd.f32 %v585, %v614
    %v626 = vadd.f32 %v586, %v616
    %v627 = vadd.f32 %v587, %v618
    %v628 = vadd.f32 %v588, %v620
    %629 = vset.pattern.permute.xlu0 7
    %630 = vperm.xlu0 %629, %v16
    %v631 = vpop.permute.xlu0 %630
    %633 = vset.pattern.permute.xlu0 7
    %634 = vperm.xlu0 %633, %v17
    %v635 = vpop.permute.xlu0 %634
    %637 = vset.pattern.permute.xlu0 7
    %638 = vperm.xlu0 %637, %v18
    %v639 = vpop.permute.xlu0 %638
    %641 = vset.pattern.permute.xlu0 7
    %642 = vperm.xlu0 %641, %v19
    %v643 = vpop.permute.xlu0 %642
    %v645 = vmul.f32 %v631, %v351
    %v646 = vmul.f32 %v635, %v354
    %v647 = vmul.f32 %v639, %v359
    %v648 = vmul.f32 %v643, %v362
    %653 = vrot.lane.b32.xlu0 %v645, 121
    %v654 = vpop.permute.xlu0 %653
    %655 = vrot.lane.b32.xlu0 %v646, 121
    %v656 = vpop.permute.xlu0 %655
    %657 = vrot.lane.b32.xlu0 %v647, 121
    %v658 = vpop.permute.xlu0 %657
    %659 = vrot.lane.b32.xlu0 %v648, 121
    %v660 = vpop.permute.xlu0 %659
    %v665 = vadd.f32 %v625, %v654
    %v666 = vadd.f32 %v626, %v656
    %v667 = vadd.f32 %v627, %v658
    %v668 = vadd.f32 %v628, %v660
    %v669 = vld [vmem:[%s1 + $0x70] sm:$0xf]
    %v670 = vld [vmem:[%s1 + $0x78] sm:$0xf]
    %v671 = vpack.c.bf16 %v666, %v665
    %v672 = vpack.c.bf16 %v668, %v667
    %673 = vset.pattern.permute.xlu0 9
    %674 = vperm.xlu0 %673, %v16
    %v675 = vpop.permute.xlu0 %674
    %677 = vset.pattern.permute.xlu0 9
    %678 = vperm.xlu0 %677, %v17
    %v679 = vpop.permute.xlu0 %678
    %v683 = vunpack.c.l.b16 %v669
    %v684 = vunpack.c.l.b16 %v670
    %v685 = vpack.c.b16 %v684, %v683
    %vm686 = vcmask 261120
    %v688 = vsel %vm686, %v685, 0
    %690 = vmatprep.subr.bf16.mxu0 0
    %691 = vmatpush1.bf16.msra.mxu0 %v671
    %692 = vmatprep.subr.bf16.mxu0 0
    %693 = vmatpush1.bf16.msra.mxu0 %v672
    %694 = vmatprep.subr.bf16.mxu0 0
    %695 = vmatpush1.bf16.msra.mxu0 0
    %696 = vmatprep.subr.bf16.mxu0 0
    %697 = vmatpush1.bf16.msra.mxu0 0
    %698 = vmatprep.subr.bf16.mxu0 0
    %699 = vmatpush1.bf16.msra.mxu0 0
    %700 = vmatprep.subr.bf16.mxu0 0
    %701 = vmatpush1.bf16.msra.mxu0 0
    %702 = vmatprep.subr.bf16.mxu0 0
    %703 = vmatpush1.bf16.msra.mxu0 0
    %704 = vmatprep.subr.bf16.mxu0 0
    %705 = vmatpush1.bf16.msra.mxu0 0
    %706 = vmatprep.subr.bf16.mxu0 0
    %707 = vmatpush1.bf16.msra.mxu0 0
    %708 = vmatprep.subr.bf16.mxu0 0
    %709 = vmatpush1.bf16.msra.mxu0 0
    %710 = vmatprep.subr.bf16.mxu0 0
    %711 = vmatpush1.bf16.msra.mxu0 0
    %712 = vmatprep.subr.bf16.mxu0 0
    %713 = vmatpush1.bf16.msra.mxu0 0
    %714 = vmatprep.subr.bf16.mxu0 0
    %715 = vmatpush1.bf16.msra.mxu0 0
    %716 = vmatprep.subr.bf16.mxu0 0
    %717 = vmatpush1.bf16.msra.mxu0 0
    %718 = vmatprep.subr.bf16.mxu0 0
    %719 = vmatpush1.bf16.msra.mxu0 0
    %720 = vmatprep.subr.bf16.mxu0 0
    %721 = vmatpush1.bf16.msra.mxu0 0
    %722 = vmatprep.mubr.bf16.mxu0 0
    %723 = vmatmul.mubr.bf16.gmra.mrb[0].mxu0 %v688
    %v724 = vpop.f32.mrb[0].mxu0
    %v725 = vadd.f32 %v675, %v724
    %v726 = vpop.f32.mrb[0].mxu0
    %v727 = vpop.f32.mrb[0].mxu0
    %v728 = vadd.f32 %v679, %v727
    %v729 = vpop.f32.mrb[0].mxu0
    %730 = vdwg.mxu0
    %vm731 = vcmp.gt.f32.partialorder %v725, 0.0
    %vm732 = vcmp.gt.f32.partialorder %v728, 0.0
    %v733 = vmin.f32 %v725, 0.0
    %v734 = vmin.f32 %v728, 0.0
    %v735 = vmul.f32 %v733, 1.442695
    %v736 = vpow.pop %v735
    %v737 = vmul.f32 %v734, 1.442695
    %v738 = vpow.pop %v737
    %v739 = vsub.f32 %v736, 1.0
    %v740 = vsub.f32 %v738, 1.0
    %v741 = vsel %vm731, %v725, %v739
    %v742 = vsel %vm732, %v728, %v740
    %v743 = vld [vmem:[%s1 + $0x80] sm:$0xf]
    %v744 = vld [vmem:[%s1 + $0x88] sm:$0xf]
    %v745 = vunpack.c.l.bf16 %v743
    %v746 = vunpack.c.l.bf16 %v744
    %v747 = vmul.f32 %v745, %v741
    %v748 = vmul.f32 %v746, %v742
    %vm749 = vcmask 138240
    %v750 = vsel %vm749, %v747, 0.0
    %751 = vadd.xlane.f32.xlu0 %v750
    %v752 = vpop.xlane.xlu0 %751
    %v753 = vsel %vm749, %v748, 0.0
    %754 = vadd.xlane.f32.xlu0 %v753
    %v755 = vpop.xlane.xlu0 %754
    %v756 = vrot.slane %v752, 4
    %v757 = vadd.f32 %v752, %v756
    %v758 = vrot.slane %v757, 2
    %v759 = vadd.f32 %v757, %v758
    %v760 = vrot.slane %v759, 1
    %v761 = vadd.f32 %v759, %v760
    %v762 = vrot.slane %v755, 4
    %v763 = vadd.f32 %v755, %v762
    %v764 = vrot.slane %v763, 2
    %v765 = vadd.f32 %v763, %v764
    %v766 = vrot.slane %v765, 1
    %v767 = vadd.f32 %v765, %v766
    %v768 = vld [vmem:[%s1 + $0x90] sm:$0xf]
    %v769 = vld [vmem:[%s1 + $0x98] sm:$0xf]
    %v770 = vunpack.c.l.bf16 %v768
    %v771 = vunpack.c.l.bf16 %v769
    %v772 = vmul.f32 %v770, %v741
    %v773 = vmul.f32 %v771, %v742
    %v774 = vsel %vm749, %v772, 0.0
    %775 = vadd.xlane.f32.xlu0 %v774
    %v776 = vpop.xlane.xlu0 %775
    %v777 = vsel %vm749, %v773, 0.0
    %778 = vadd.xlane.f32.xlu0 %v777
    %v779 = vpop.xlane.xlu0 %778
    %v780 = vrot.slane %v776, 4
    %v781 = vadd.f32 %v776, %v780
    %v782 = vrot.slane %v781, 2
    %v783 = vadd.f32 %v781, %v782
    %v784 = vrot.slane %v783, 1
    %v785 = vadd.f32 %v783, %v784
    %v786 = vrot.slane %v779, 4
    %v787 = vadd.f32 %v779, %v786
    %v788 = vrot.slane %v787, 2
    %v789 = vadd.f32 %v787, %v788
    %v790 = vrot.slane %v789, 1
    %v791 = vadd.f32 %v789, %v790
    %vm794 = vcmask 1041409
    %v795 = vsel %vm794, %v767, %v761
    %v799 = vsel %vm794, %v791, %v785
    %vm801 = vcmask 7168
    %v802 = vsel %vm801, %v795, %v799
    %vm803 = vcmask 9216
    %v804 = vsel %vm803, %v802, -inf
    %805 = vmax.xlane.f32.xlu0 %v804
    %v806 = vpop.xlane.xlu0 %805
    %v807 = vsub.f32 %v802, %v806
    %v808 = vmul.f32 %v807, 1.442695
    %v809 = vpow.pop %v808
    %v810 = vsel %vm803, %v809, 0.0
    %811 = vadd.xlane.f32.xlu0 %v810
    %v812 = vpop.xlane.xlu0 %811
    %v813 = vrcp.pop %v812
    %v814 = vmul.f32 %v809, %v813
    %v815 = vsel %vm803, %v814, -inf
    %816 = vmax.xlane.f32.xlu0 %v815
    %v817 = vpop.xlane.xlu0 %816
    %v818 = vsub.f32 %v814, %v817
    %v819 = vmul.f32 %v818, 1.442695
    %v820 = vpow.pop %v819
    %v821 = vsel %vm803, %v820, 0.0
    %822 = vadd.xlane.f32.xlu0 %v821
    %v823 = vpop.xlane.xlu0 %822
    %v824 = vrcp.pop %v823
    %v825 = vmul.f32 %v820, %v824
    %826 = vst.msk [vmem:[#allocation2] sm:$0x3] %vm803, %v825
    // Predicated region
    $region14: #{eegnet_forward.1} parent=1 // pred_check
      _
    $region15: #{eegnet_forward.1} parent=1 // pred_check_branch
      %828 = sbr.rel (0) target = $region17
    $region16: #{eegnet_forward.1} parent=1 // pred_region
      %s830 = ssub.s32 32, 32
      %831 = vsyncadd [#allocation3], %s830
      %s833 = sshll.u32 [#allocation2], 4
      %s834 = int_to_ptr.vmem [resolvable:$true] %s833
      %836 = dma.vmem_to_hbm [thread:$0]  %s834, 32, %s3, [#allocation3]
    $region17: #{eegnet_forward.1} parent=1 // pred_fallthru
      _
    // Predicated region
    $region18: #{eegnet_forward.1} parent=1 // pred_check
      _
    $region19: #{eegnet_forward.1} parent=1 // pred_check_branch
      %838 = sbr.rel (0) target = $region21
    $region20: #{eegnet_forward.1} parent=1 // pred_region
      %839 = dma.done [#allocation3], 32
    $region21: #{eegnet_forward.1} parent=1 // pred_fallthru
      _
    %840 = vsyncpa [#allocation3], 1

</llo_original>
